<compile_context>
chip_gen: v7x
topology: tpu7x:2x2x1
jax: 0.10.0
libtpu: 0.0.40
codegen_flags: <defaults>
</compile_context>

<pallas_src>
import jax
import jax.numpy as jnp
from jax.experimental import pallas as pl
from jax.experimental.pallas import tpu as pltpu

_LANES = 128
# 8192 rows * 128 lanes * 4 B = 4 MiB per output block (8 MiB double-buffered)
# -> fits v5e's 16 MiB scoped-VMEM default and v6e/v7x's 32 MiB.
_MAX_BLOCK_ROWS = 8192
# Above this many rows, split into >= 2 blocks so the "parallel" grid axis has
# something to shard across v7x's two TensorCores and the output pipeline can
# overlap fill with writeback.
_SPLIT_THRESHOLD_ROWS = 1024


def _single_variance_kernel(var_ref, o_ref):
    # var_ref: SMEM (1,) float32 -- the RAW `variance` parameter.
    # o_ref:   VMEM (block_rows, 128) float32 lane-dense output tile.
    #
    # Compute exp(10 * variance) once on a tiny (1,1) tile (one vreg on the
    # EUP -- free under the output DMA), then splat it over the block.
    v = jnp.exp(jnp.full((1, 1), var_ref[0], dtype=jnp.float32) * 10.0)
    o_ref[...] = jnp.broadcast_to(v, o_ref.shape).astype(o_ref.dtype)


def _choose_block_rows(rows, max_block_rows, split_threshold):
    """Pick a block height: big (near max) but >= 2 grid steps for large N."""
    if rows > split_threshold:
        # Aim for (at least) two roughly equal blocks; keep sublanes x8.
        half = int(pl.cdiv(rows, 2))
        half = ((half + 7) // 8) * 8
        block_rows = min(max_block_rows, half)
    else:
        block_rows = min(rows, max_block_rows)
    if block_rows != rows and block_rows % 8 != 0:
        # (8, 128) tiling constraint applies unless the block covers the
        # whole array extent.
        block_rows = max((block_rows // 8) * 8, 8)
    return block_rows


def single_variance_forward(x, variance, *,
                            max_block_rows=_MAX_BLOCK_ROWS,
                            split_threshold=_SPLIT_THRESHOLD_ROWS):
    """Pallas equivalent of SingleVarianceNetwork.forward.

    x:        (N, ...) array (only its leading dim is used, as in PyTorch).
    variance: (1,) float32 parameter.
    returns:  (N, 1) float32 = exp(variance * 10) broadcast.
    """
    n = x.shape[0]

    # Raw parameter goes straight into SMEM; exp(10*v) is done in-kernel.
    var = variance.astype(jnp.float32).reshape((1,))

    # Lane-dense slab layout: N values packed as (rows, 128).
    rows = max(int(pl.cdiv(n, _LANES)), 1)
    block_rows = _choose_block_rows(rows, max_block_rows, split_threshold)
    grid = (int(pl.cdiv(rows, block_rows)),)

    slab = pl.pallas_call(
        _single_variance_kernel,
        out_shape=jax.ShapeDtypeStruct((rows, _LANES), jnp.float32),
        grid_spec=pltpu.PrefetchScalarGridSpec(
            num_scalar_prefetch=0,
            grid=grid,
            in_specs=[pl.BlockSpec(memory_space=pltpu.MemorySpace.SMEM)],
            out_specs=pl.BlockSpec((block_rows, _LANES), lambda i: (i, 0)),
        ),
        compiler_params=pltpu.CompilerParams(
            dimension_semantics=("parallel",),
        ),
    )(var)

    # Free bitcast: every element is identical, so the lane-dense slab maps
    # exactly onto the column vector. Only slice when N is not lane-aligned
    # (the slice costs an extra HBM read+write; lane-aligned N avoids it).
    out = slab.reshape(rows * _LANES, 1)
    if rows * _LANES != n:
        out = out[:n]
    return out


def get_variance(variance):
    """SingleVarianceNetwork.get_variance: exp(10*v) clipped.

    Intentionally plain JAX: a Pallas custom call for one scalar exp+clip
    costs more in launch/DMA overhead than letting XLA fuse it.
    """
    return jnp.clip(jnp.exp(variance.astype(jnp.float32) * 10.0), 1e-6, 1e6)


if __name__ == "__main__":
    key = jax.random.PRNGKey(0)

    # Deterministic parameter init: variance = init_val * ones(1)
    init_val = 0.3
    variance = jnp.array([init_val], dtype=jnp.float32)
    expected_val = jnp.exp(variance * 10.0)  # reference scalar

    # Small shapes: non-multiple-of-128 N (pad-and-slice path) and aligned N.
    x_small = jax.random.normal(key, (200, 3), dtype=jnp.float32)
    x_aligned = jax.random.normal(key, (128, 3), dtype=jnp.float32)

    for x in (x_small, x_aligned):
        out = jax.block_until_ready(single_variance_forward(x, variance))
        ref = jnp.ones((x.shape[0], 1), jnp.float32) * expected_val
        assert out.shape == (x.shape[0], 1)
        assert jnp.allclose(out, ref, rtol=1e-6, atol=1e-6)

    # Exercise the multi-block (grid >= 2) + ragged-last-block path with a
    # small N by shrinking the block/threshold knobs.
    x_multi = jax.random.normal(key, (2050, 3), dtype=jnp.float32)
    out = jax.block_until_ready(
        single_variance_forward(x_multi, variance,
                                max_block_rows=8, split_threshold=8))
    ref = jnp.ones((2050, 1), jnp.float32) * expected_val
    assert out.shape == (2050, 1)
    assert jnp.allclose(out, ref, rtol=1e-6, atol=1e-6)

    gv = jax.block_until_ready(get_variance(variance))
    gv_ref = jnp.clip(jnp.exp(variance * 10.0), 1e-6, 1e6)
    assert jnp.allclose(gv, gv_ref, rtol=1e-6, atol=1e-6)

    print("KERNEL_OK")
</pallas_src>

<mosaic_0001>
module attributes {stable_mosaic.version = 11 : i64} {
  func.func @_single_variance_kernel(%arg0: i32, %arg1: memref<1xf32, #tpu.memory_space<smem>>, %arg2: memref<2x128xf32, #tpu.memory_space<vmem>>) attributes {dimension_semantics = [#tpu.dimension_semantics<parallel>], iteration_bounds = array<i64: 1>, scalar_prefetch = 0 : i64, scratch_operands = 0 : i64, tpu.core_type = #tpu.core_type<tc>, window_params = [{transform_indices = @transform_0, window_bounds = array<i64: 1>}, {transform_indices = @transform_1, window_bounds = array<i64: 2, 128>}]} {
    %c0 = arith.constant 0 : index
    %0 = memref.load %arg1[%c0] : memref<1xf32, #tpu.memory_space<smem>>
    %1 = vector.broadcast %0 : f32 to vector<1x1xf32>
    %cst = arith.constant 1.000000e+01 : f32
    %2 = vector.broadcast %cst : f32 to vector<1x1xf32>
    %3 = arith.mulf %1, %2 : vector<1x1xf32>
    %4 = math.exp %3 : vector<1x1xf32>
    %5 = vector.shape_cast %4 : vector<1x1xf32> to vector<1x1xf32>
    %6 = vector.broadcast %5 : vector<1x1xf32> to vector<2x128xf32>
    %c0_0 = arith.constant 0 : index
    %c0_1 = arith.constant 0 : index
    %7 = vector.load %arg2[%c0_0, %c0_1] : memref<2x128xf32, #tpu.memory_space<vmem>>, vector<2x128xf32>
    tpu.vector_store %arg2[%c0_0, %c0_1], %6 {strides = array<i32>} : memref<2x128xf32, #tpu.memory_space<vmem>>, vector<2x128xf32>,
    return
  }
  func.func @transform_0(%arg0: i32) -> i32 {
    %c0_i32 = arith.constant 0 : i32
    %c0_i32_0 = arith.constant 0 : i32
    return %c0_i32 : i32
  }
  func.func @transform_1(%arg0: i32) -> (i32, i32) {
    %c0_i32 = arith.constant 0 : i32
    %c0_i32_0 = arith.constant 0 : i32
    return %arg0, %c0_i32 : i32, i32
  }
}

</mosaic_0001>

<llo_original>
// kernel: tpu_custom_call.1
$region0: #{tpu_custom_call.1}
  #allocation0 [shape = 'u32[]', space=smem, size = 0x4, offset = 0x4, fixed_abs, tag = 'smem constant byte address 0x4 - core index']
  #allocation1 [shape = 'u32[144,128]{1,0:T(1,128)}', space=vmem, size = 0x12000, scoped, tag = 'internal scratch']
  #allocation2 [shape = 'f32[1]{0:T(128)S(6)}', space=smem, size = 0x200, scoped, tag = 'scoped memory for tpu_custom_call.1']
  %s0 = inlined_call_operand.<no memory space> [shape: f32[1], index: 0, kind: input, shape index: {}]
  %s1 = inlined_call_operand.hbm [shape: f32[2,128], index: 1, kind: output, shape index: {}]
  %s2 = sld [smem:[#allocation0]]
  $region14: #{tpu_custom_call.1} parent=0
    _
  %s4 = ssub.s32 1, %s2
  %s5 = scalar_select 0, %s4, %s2
  %6 = sst [smem:[#allocation2]] %s0
  $region1: #{tpu_custom_call.1} parent=0
    #allocation3 [shape = 'u8[1024]{0}', space=vmem, size = 0x400, scoped, tag = 'output window, operand 0, single buffered']
    #allocation4 [shape = 's32[1]{0}', space=sflag, size = 0x4, scoped, tag = 'scoped memory for tpu_custom_call.1']
    %7 = vsyncpa [#allocation4], 0
    // Predicated region
    $region2: #{tpu_custom_call.1} parent=1 // pred_check
      _
    $region3: #{tpu_custom_call.1} parent=1 // pred_check_branch
      %9 = sbr.rel (0) target = $region5
    $region4: #{tpu_custom_call.1} parent=1 // pred_region
      _
    $region5: #{tpu_custom_call.1} parent=1 // pred_fallthru
      _
    %s10 = sld [smem:[#allocation2]]
    %v11 = vstv %s10
    %v12 = vmul.f32 %v11, 10.0
    %v13 = vmul.f32 %v12, 1.442695
    %v14 = vpow.pop %v13
    %15 = vst [vmem:[#allocation3] sm:$0x3] %v14
    // Predicated region
    $region6: #{tpu_custom_call.1} parent=1 // pred_check
      _
    $region7: #{tpu_custom_call.1} parent=1 // pred_check_branch
      %17 = sbr.rel (0) target = $region9
    $region8: #{tpu_custom_call.1} parent=1 // pred_region
      %s19 = ssub.s32 32, 32
      %20 = vsyncadd [#allocation4], %s19
      %s22 = sshll.u32 [#allocation3], 4
      %s23 = int_to_ptr.vmem [resolvable:$true] %s22
      %25 = dma.vmem_to_hbm [thread:$0]  %s23, 32, %s1, [#allocation4]
    $region9: #{tpu_custom_call.1} parent=1 // pred_fallthru
      _
    // Predicated region
    $region10: #{tpu_custom_call.1} parent=1 // pred_check
      _
    $region11: #{tpu_custom_call.1} parent=1 // pred_check_branch
      %27 = sbr.rel (0) target = $region13
    $region12: #{tpu_custom_call.1} parent=1 // pred_region
      %28 = dma.done [#allocation4], 32
    $region13: #{tpu_custom_call.1} parent=1 // pred_fallthru
      _
    %29 = vsyncpa [#allocation4], 1

</llo_original>
